<compile_context>
chip_gen: v7x
topology: tpu7x:2x2x1
jax: 0.10.0
libtpu: 0.0.40
codegen_flags: <defaults>
</compile_context>

<pallas_src>
import jax
import jax.numpy as jnp
from jax import lax
from jax.experimental import pallas as pl
from jax.experimental.pallas import tpu as pltpu


_LANE_PAD = 128      # lane-dense output width (unmasked stores / single DMA)
_STATE_ROWS = 8      # sublane-aligned state block appended to the output slab


# ----------------------------- Pallas kernel ------------------------------- #

def lstm_audio_kernel(x_ref, xflat_ref, wih_ref, whh_ref, b_ref,
                      wout_ref, bout_ref, out_ref):
    """Fused forward pass.

    x_ref:     (T, A)        input sequence (LSTM input)
    xflat_ref: (N, H)        same data viewed as (-1, H) (Linear input)
    wih_ref:   (A, 4H)       W_ih^T, gate columns i,f,g,o; i/f/o pre-scaled by 0.5
    whh_ref:   (H, 4H)       W_hh^T, gate columns i,f,g,o; i/f/o pre-scaled by 0.5
    b_ref:     (1, 4H)       (b_ih + b_hh), i/f/o slots pre-scaled by 0.5
    wout_ref:  (H, P)        W_out^T zero-padded to P=128 lanes
    bout_ref:  (1, P)        b_out zero-padded to P=128 lanes
    out_ref:   (N_pad+8, P)  rows [0:N) = log_softmax slab (padded),
                             rows [N_pad:N_pad+8) = state block (h in row 0, c in row 1)
    """
    T = x_ref.shape[0]
    H = whh_ref.shape[0]
    N = xflat_ref.shape[0]
    P = out_ref.shape[1]
    state_row0 = out_ref.shape[0] - _STATE_ROWS

    # ---- Linear + log_softmax on the raw input (independent of the LSTM) ----
    # Lives in the same basic block as the recurrence so the LLO scheduler can
    # fill the recurrence's dead slots with it.
    logits = (jnp.dot(xflat_ref[...], wout_ref[...],
                      preferred_element_type=jnp.float32) + bout_ref[...])
    m = jnp.max(logits, axis=0, keepdims=True)
    z = logits - m
    lse = jnp.log(jnp.sum(jnp.exp(z), axis=0, keepdims=True))
    out_ref[0:N, :] = z - lse

    # ---- LSTM recurrence: fused gates, hoisted input projection -------------
    # One MXU call for all timesteps' input projections: (T, A) @ (A, 4H).
    xproj = (jnp.dot(x_ref[...], wih_ref[...],
                     preferred_element_type=jnp.float32) + b_ref[...])   # (T, 4H)
    whh = whh_ref[...]                                                   # (H, 4H)

    h = jnp.zeros((1, H), jnp.float32)
    c = jnp.zeros((1, H), jnp.float32)

    # T is small and static: fully unroll so the scheduler sees across steps.
    for t in range(T):
        gates = xproj[t:t + 1, :] + jnp.dot(
            h, whh, preferred_element_type=jnp.float32)                  # (1, 4H)
        # Single full-vreg tanh gives all four gates (i/f/o were pre-scaled
        # by 0.5, so sigmoid(raw) = 0.5 * (tanh(0.5*raw) + 1)).
        t_all = jnp.tanh(gates)                                          # 1 EUP push
        s_all = 0.5 * t_all + 0.5                                        # full-vreg VALU
        i = s_all[:, 0 * H:1 * H]
        f = s_all[:, 1 * H:2 * H]
        g = t_all[:, 2 * H:3 * H]
        o = s_all[:, 3 * H:4 * H]
        c = f * c + i * g
        h = o * jnp.tanh(c)

    # ---- pack h, c into the state block of the single output slab -----------
    out_ref[state_row0:state_row0 + _STATE_ROWS, :] = jnp.zeros((_STATE_ROWS, P),
                                                                jnp.float32)
    out_ref[state_row0:state_row0 + 1, 0:H] = h
    out_ref[state_row0 + 1:state_row0 + 2, 0:H] = c


# ------------------------------ JAX wrapper -------------------------------- #

def lstm_audio_forward(x, params):
    """Mirrors LSTM_audio.forward (eval mode). x: (seq_len, audio_dim)."""
    seq_len, audio_dim = x.shape
    H = params["hidden_dim"]
    # The original module hard-codes .view(-1, 20); anything else diverges.
    assert H == 20, "LSTM_audio.forward requires hidden_dim == 20 (view(-1, 20))"
    assert (seq_len * audio_dim) % H == 0, "view(-1, hidden_dim) must be valid"

    # Dropout (p=0.2) in eval mode: identity.
    x_seq = x.reshape(seq_len, audio_dim)          # x.view(1, len(x), -1)[0]
    x_flat = x.reshape(-1, H)                      # x.view(-1, 20)
    N = x_flat.shape[0]
    N_pad = ((N + 7) // 8) * 8                     # sublane-align the state block
    rows = N_pad + _STATE_ROWS
    P = _LANE_PAD

    # Fused gate weights (gate order i,f,g,o) with the sigmoid gates' columns
    # pre-scaled by 0.5 so a single tanh covers all four nonlinearities.
    gate_scale = jnp.concatenate(
        [jnp.full((1, H), 0.5, jnp.float32),       # i
         jnp.full((1, H), 0.5, jnp.float32),       # f
         jnp.ones((1, H), jnp.float32),            # g (plain tanh)
         jnp.full((1, H), 0.5, jnp.float32)],      # o
        axis=1)                                    # (1, 4H)
    wih_t = params["w_ih"].T * gate_scale                                   # (A, 4H)
    whh_t = params["w_hh"].T * gate_scale                                   # (H, 4H)
    b_gates = (params["b_ih"] + params["b_hh"]).reshape(1, 4 * H) * gate_scale

    # Lane-dense (128-wide) Linear weights/bias; padded columns are dropped later.
    w_out_t = jnp.zeros((H, P), jnp.float32).at[:, :audio_dim].set(params["w_out"].T)
    b_out = jnp.zeros((1, P), jnp.float32).at[:, :audio_dim].set(params["b_out"])

    vmem = pl.BlockSpec(memory_space=pltpu.MemorySpace.VMEM)

    slab = pl.pallas_call(
        lstm_audio_kernel,
        out_shape=jax.ShapeDtypeStruct((rows, P), jnp.float32),
        in_specs=[vmem] * 7,
        out_specs=vmem,
    )(x_seq, x_flat, wih_t, whh_t, b_gates, w_out_t, b_out)

    out_pred = slab[:N, :audio_dim]
    h_t = slab[N_pad:N_pad + 1, :H].reshape(1, 1, H)
    c_t = slab[N_pad + 1:N_pad + 2, :H].reshape(1, 1, H)
    # PyTorch returns h_t, c_t with shape (num_layers*num_dirs, batch, H) = (1, 1, H).
    return out_pred, (h_t, c_t)


# ----------------------------- pure-JAX reference --------------------------- #

def reference_forward(x, params):
    seq_len, audio_dim = x.shape
    H = params["hidden_dim"]
    w_ih, w_hh = params["w_ih"], params["w_hh"]
    b = params["b_ih"] + params["b_hh"]

    def step(carry, x_t):
        h, c = carry
        gates = x_t @ w_ih.T + h @ w_hh.T + b
        i, f, g, o = jnp.split(gates, 4)
        i, f, o = jax.nn.sigmoid(i), jax.nn.sigmoid(f), jax.nn.sigmoid(o)
        g = jnp.tanh(g)
        c = f * c + i * g
        h = o * jnp.tanh(c)
        return (h, c), h

    (h, c), _ = lax.scan(step, (jnp.zeros(H, jnp.float32),
                                jnp.zeros(H, jnp.float32)), x)
    x_flat = x.reshape(-1, H)
    logits = x_flat @ params["w_out"].T + params["b_out"]
    out = jax.nn.log_softmax(logits, axis=0)
    return out, (h.reshape(1, 1, H), c.reshape(1, 1, H))


# --------------------------------- params ----------------------------------- #

def init_params(key, audio_dim, hidden_dim):
    bound = 1.0 / float(hidden_dim) ** 0.5
    ks = jax.random.split(key, 6)

    def u(k, shape):
        return jax.random.uniform(k, shape, jnp.float32, -bound, bound)

    return {
        "hidden_dim": hidden_dim,
        "w_ih": u(ks[0], (4 * hidden_dim, audio_dim)),
        "w_hh": u(ks[1], (4 * hidden_dim, hidden_dim)),
        "b_ih": u(ks[2], (4 * hidden_dim,)),
        "b_hh": u(ks[3], (4 * hidden_dim,)),
        "w_out": u(ks[4], (audio_dim, hidden_dim)),   # nn.Linear(hidden, audio)
        "b_out": u(ks[5], (audio_dim,)),
    }


if __name__ == "__main__":
    audio_dim = 40
    hidden_dim = 20        # the original forward's .view(-1, 20) requires this
    seq_len = 8

    key = jax.random.PRNGKey(0)
    kx, kp = jax.random.split(key)
    x = jax.random.normal(kx, (seq_len, audio_dim), jnp.float32)
    params = init_params(kp, audio_dim, hidden_dim)

    out_pred, (h_t, c_t) = lstm_audio_forward(x, params)
    jax.block_until_ready((out_pred, h_t, c_t))

    ref_out, (ref_h, ref_c) = reference_forward(x, params)
    assert out_pred.shape == (seq_len * audio_dim // hidden_dim, audio_dim)
    assert h_t.shape == (1, 1, hidden_dim) and c_t.shape == (1, 1, hidden_dim)
    assert jnp.allclose(out_pred, ref_out, atol=1e-5, rtol=1e-5)
    assert jnp.allclose(h_t, ref_h, atol=1e-5, rtol=1e-5)
    assert jnp.allclose(c_t, ref_c, atol=1e-5, rtol=1e-5)

    print("KERNEL_OK")
</pallas_src>

<mosaic_0001>
module attributes {stable_mosaic.version = 11 : i64} {
  func.func @lstm_audio_kernel(%arg0: memref<8x40xf32, #tpu.memory_space<vmem>>, %arg1: memref<16x20xf32, #tpu.memory_space<vmem>>, %arg2: memref<40x80xf32, #tpu.memory_space<vmem>>, %arg3: memref<20x80xf32, #tpu.memory_space<vmem>>, %arg4: memref<1x80xf32, #tpu.memory_space<vmem>>, %arg5: memref<20x128xf32, #tpu.memory_space<vmem>>, %arg6: memref<1x128xf32, #tpu.memory_space<vmem>>, %arg7: memref<24x128xf32, #tpu.memory_space<vmem>>) attributes {dimension_semantics = [], scalar_prefetch = 0 : i64, scratch_operands = 0 : i64, tpu.core_type = #tpu.core_type<tc>} {
    %c0 = arith.constant 0 : index
    %c0_0 = arith.constant 0 : index
    %0 = vector.load %arg1[%c0, %c0_0] : memref<16x20xf32, #tpu.memory_space<vmem>>, vector<16x20xf32>
    %c0_1 = arith.constant 0 : index
    %c0_2 = arith.constant 0 : index
    %1 = vector.load %arg5[%c0_1, %c0_2] : memref<20x128xf32, #tpu.memory_space<vmem>>, vector<20x128xf32>
    %cst = arith.constant dense<0.000000e+00> : vector<16x128xf32>
    %2 = tpu.matmul %0, %1, %cst {dimension_numbers = #tpu.dot_dimension_numbers<[1], [0], [0], [1], [0, 0, 1, 1], [], []>} : vector<16x20xf32>, vector<20x128xf32>, vector<16x128xf32> -> vector<16x128xf32>
    %c0_3 = arith.constant 0 : index
    %c0_4 = arith.constant 0 : index
    %3 = vector.load %arg6[%c0_3, %c0_4] : memref<1x128xf32, #tpu.memory_space<vmem>>, vector<1x128xf32>
    %4 = vector.broadcast %3 : vector<1x128xf32> to vector<16x128xf32>
    %5 = arith.addf %2, %4 : vector<16x128xf32>
    %cst_5 = arith.constant dense<0xFF800000> : vector<128xf32>
    %6 = vector.multi_reduction <maximumf>, %5, %cst_5 [0] : vector<16x128xf32> to vector<128xf32>
    %7 = vector.shape_cast %6 : vector<128xf32> to vector<1x128xf32>
    %8 = vector.broadcast %7 : vector<1x128xf32> to vector<16x128xf32>
    %9 = arith.subf %5, %8 : vector<16x128xf32>
    %10 = math.exp %9 : vector<16x128xf32>
    %cst_6 = arith.constant dense<0.000000e+00> : vector<128xf32>
    %11 = vector.multi_reduction <add>, %10, %cst_6 [0] : vector<16x128xf32> to vector<128xf32>
    %12 = vector.shape_cast %11 : vector<128xf32> to vector<1x128xf32>
    %13 = math.log %12 : vector<1x128xf32>
    %14 = vector.broadcast %13 : vector<1x128xf32> to vector<16x128xf32>
    %15 = arith.subf %9, %14 : vector<16x128xf32>
    %c0_7 = arith.constant 0 : index
    %c0_8 = arith.constant 0 : index
    %16 = vector.load %arg7[%c0_7, %c0_8] : memref<24x128xf32, #tpu.memory_space<vmem>>, vector<16x128xf32>
    tpu.vector_store %arg7[%c0_7, %c0_8], %15 {strides = array<i32>} : memref<24x128xf32, #tpu.memory_space<vmem>>, vector<16x128xf32>,
    %c0_9 = arith.constant 0 : index
    %c0_10 = arith.constant 0 : index
    %17 = vector.load %arg0[%c0_9, %c0_10] : memref<8x40xf32, #tpu.memory_space<vmem>>, vector<8x40xf32>
    %c0_11 = arith.constant 0 : index
    %c0_12 = arith.constant 0 : index
    %18 = vector.load %arg2[%c0_11, %c0_12] : memref<40x80xf32, #tpu.memory_space<vmem>>, vector<40x80xf32>
    %cst_13 = arith.constant dense<0.000000e+00> : vector<8x80xf32>
    %19 = tpu.matmul %17, %18, %cst_13 {dimension_numbers = #tpu.dot_dimension_numbers<[1], [0], [0], [1], [0, 0, 1, 1], [], []>} : vector<8x40xf32>, vector<40x80xf32>, vector<8x80xf32> -> vector<8x80xf32>
    %c0_14 = arith.constant 0 : index
    %c0_15 = arith.constant 0 : index
    %20 = vector.load %arg4[%c0_14, %c0_15] : memref<1x80xf32, #tpu.memory_space<vmem>>, vector<1x80xf32>
    %21 = vector.broadcast %20 : vector<1x80xf32> to vector<8x80xf32>
    %22 = arith.addf %19, %21 : vector<8x80xf32>
    %c0_16 = arith.constant 0 : index
    %c0_17 = arith.constant 0 : index
    %23 = vector.load %arg3[%c0_16, %c0_17] : memref<20x80xf32, #tpu.memory_space<vmem>>, vector<20x80xf32>
    %cst_18 = arith.constant 0.000000e+00 : f32
    %24 = vector.broadcast %cst_18 : f32 to vector<1x20xf32>
    %cst_19 = arith.constant 0.000000e+00 : f32
    %25 = vector.broadcast %cst_19 : f32 to vector<1x20xf32>
    %26 = vector.extract_strided_slice %22 {offsets = [0, 0], sizes = [1, 80], strides = [1, 1]} : vector<8x80xf32> to vector<1x80xf32>
    %cst_20 = arith.constant dense<0.000000e+00> : vector<1x80xf32>
    %27 = tpu.matmul %24, %23, %cst_20 {dimension_numbers = #tpu.dot_dimension_numbers<[1], [0], [0], [1], [0, 0, 1, 1], [], []>} : vector<1x20xf32>, vector<20x80xf32>, vector<1x80xf32> -> vector<1x80xf32>
    %28 = arith.addf %26, %27 : vector<1x80xf32>
    %29 = math.tanh %28 : vector<1x80xf32>
    %cst_21 = arith.constant 5.000000e-01 : f32
    %30 = vector.broadcast %cst_21 : f32 to vector<1x80xf32>
    %31 = arith.mulf %30, %29 : vector<1x80xf32>
    %cst_22 = arith.constant 5.000000e-01 : f32
    %32 = vector.broadcast %cst_22 : f32 to vector<1x80xf32>
    %33 = arith.addf %31, %32 : vector<1x80xf32>
    %34 = vector.extract_strided_slice %33 {offsets = [0, 0], sizes = [1, 20], strides = [1, 1]} : vector<1x80xf32> to vector<1x20xf32>
    %35 = vector.extract_strided_slice %33 {offsets = [0, 20], sizes = [1, 20], strides = [1, 1]} : vector<1x80xf32> to vector<1x20xf32>
    %36 = vector.extract_strided_slice %29 {offsets = [0, 40], sizes = [1, 20], strides = [1, 1]} : vector<1x80xf32> to vector<1x20xf32>
    %37 = vector.extract_strided_slice %33 {offsets = [0, 60], sizes = [1, 20], strides = [1, 1]} : vector<1x80xf32> to vector<1x20xf32>
    %38 = arith.mulf %35, %25 : vector<1x20xf32>
    %39 = arith.mulf %34, %36 : vector<1x20xf32>
    %40 = arith.addf %38, %39 : vector<1x20xf32>
    %41 = math.tanh %40 : vector<1x20xf32>
    %42 = arith.mulf %37, %41 : vector<1x20xf32>
    %43 = vector.extract_strided_slice %22 {offsets = [1, 0], sizes = [1, 80], strides = [1, 1]} : vector<8x80xf32> to vector<1x80xf32>
    %cst_23 = arith.constant dense<0.000000e+00> : vector<1x80xf32>
    %44 = tpu.matmul %42, %23, %cst_23 {dimension_numbers = #tpu.dot_dimension_numbers<[1], [0], [0], [1], [0, 0, 1, 1], [], []>} : vector<1x20xf32>, vector<20x80xf32>, vector<1x80xf32> -> vector<1x80xf32>
    %45 = arith.addf %43, %44 : vector<1x80xf32>
    %46 = math.tanh %45 : vector<1x80xf32>
    %cst_24 = arith.constant 5.000000e-01 : f32
    %47 = vector.broadcast %cst_24 : f32 to vector<1x80xf32>
    %48 = arith.mulf %47, %46 : vector<1x80xf32>
    %cst_25 = arith.constant 5.000000e-01 : f32
    %49 = vector.broadcast %cst_25 : f32 to vector<1x80xf32>
    %50 = arith.addf %48, %49 : vector<1x80xf32>
    %51 = vector.extract_strided_slice %50 {offsets = [0, 0], sizes = [1, 20], strides = [1, 1]} : vector<1x80xf32> to vector<1x20xf32>
    %52 = vector.extract_strided_slice %50 {offsets = [0, 20], sizes = [1, 20], strides = [1, 1]} : vector<1x80xf32> to vector<1x20xf32>
    %53 = vector.extract_strided_slice %46 {offsets = [0, 40], sizes = [1, 20], strides = [1, 1]} : vector<1x80xf32> to vector<1x20xf32>
    %54 = vector.extract_strided_slice %50 {offsets = [0, 60], sizes = [1, 20], strides = [1, 1]} : vector<1x80xf32> to vector<1x20xf32>
    %55 = arith.mulf %52, %40 : vector<1x20xf32>
    %56 = arith.mulf %51, %53 : vector<1x20xf32>
    %57 = arith.addf %55, %56 : vector<1x20xf32>
    %58 = math.tanh %57 : vector<1x20xf32>
    %59 = arith.mulf %54, %58 : vector<1x20xf32>
    %60 = vector.extract_strided_slice %22 {offsets = [2, 0], sizes = [1, 80], strides = [1, 1]} : vector<8x80xf32> to vector<1x80xf32>
    %cst_26 = arith.constant dense<0.000000e+00> : vector<1x80xf32>
    %61 = tpu.matmul %59, %23, %cst_26 {dimension_numbers = #tpu.dot_dimension_numbers<[1], [0], [0], [1], [0, 0, 1, 1], [], []>} : vector<1x20xf32>, vector<20x80xf32>, vector<1x80xf32> -> vector<1x80xf32>
    %62 = arith.addf %60, %61 : vector<1x80xf32>
    %63 = math.tanh %62 : vector<1x80xf32>
    %cst_27 = arith.constant 5.000000e-01 : f32
    %64 = vector.broadcast %cst_27 : f32 to vector<1x80xf32>
    %65 = arith.mulf %64, %63 : vector<1x80xf32>
    %cst_28 = arith.constant 5.000000e-01 : f32
    %66 = vector.broadcast %cst_28 : f32 to vector<1x80xf32>
    %67 = arith.addf %65, %66 : vector<1x80xf32>
    %68 = vector.extract_strided_slice %67 {offsets = [0, 0], sizes = [1, 20], strides = [1, 1]} : vector<1x80xf32> to vector<1x20xf32>
    %69 = vector.extract_strided_slice %67 {offsets = [0, 20], sizes = [1, 20], strides = [1, 1]} : vector<1x80xf32> to vector<1x20xf32>
    %70 = vector.extract_strided_slice %63 {offsets = [0, 40], sizes = [1, 20], strides = [1, 1]} : vector<1x80xf32> to vector<1x20xf32>
    %71 = vector.extract_strided_slice %67 {offsets = [0, 60], sizes = [1, 20], strides = [1, 1]} : vector<1x80xf32> to vector<1x20xf32>
    %72 = arith.mulf %69, %57 : vector<1x20xf32>
    %73 = arith.mulf %68, %70 : vector<1x20xf32>
    %74 = arith.addf %72, %73 : vector<1x20xf32>
    %75 = math.tanh %74 : vector<1x20xf32>
    %76 = arith.mulf %71, %75 : vector<1x20xf32>
    %77 = vector.extract_strided_slice %22 {offsets = [3, 0], sizes = [1, 80], strides = [1, 1]} : vector<8x80xf32> to vector<1x80xf32>
    %cst_29 = arith.constant dense<0.000000e+00> : vector<1x80xf32>
    %78 = tpu.matmul %76, %23, %cst_29 {dimension_numbers = #tpu.dot_dimension_numbers<[1], [0], [0], [1], [0, 0, 1, 1], [], []>} : vector<1x20xf32>, vector<20x80xf32>, vector<1x80xf32> -> vector<1x80xf32>
    %79 = arith.addf %77, %78 : vector<1x80xf32>
    %80 = math.tanh %79 : vector<1x80xf32>
    %cst_30 = arith.constant 5.000000e-01 : f32
    %81 = vector.broadcast %cst_30 : f32 to vector<1x80xf32>
    %82 = arith.mulf %81, %80 : vector<1x80xf32>
    %cst_31 = arith.constant 5.000000e-01 : f32
    %83 = vector.broadcast %cst_31 : f32 to vector<1x80xf32>
    %84 = arith.addf %82, %83 : vector<1x80xf32>
    %85 = vector.extract_strided_slice %84 {offsets = [0, 0], sizes = [1, 20], strides = [1, 1]} : vector<1x80xf32> to vector<1x20xf32>
    %86 = vector.extract_strided_slice %84 {offsets = [0, 20], sizes = [1, 20], strides = [1, 1]} : vector<1x80xf32> to vector<1x20xf32>
    %87 = vector.extract_strided_slice %80 {offsets = [0, 40], sizes = [1, 20], strides = [1, 1]} : vector<1x80xf32> to vector<1x20xf32>
    %88 = vector.extract_strided_slice %84 {offsets = [0, 60], sizes = [1, 20], strides = [1, 1]} : vector<1x80xf32> to vector<1x20xf32>
    %89 = arith.mulf %86, %74 : vector<1x20xf32>
    %90 = arith.mulf %85, %87 : vector<1x20xf32>
    %91 = arith.addf %89, %90 : vector<1x20xf32>
    %92 = math.tanh %91 : vector<1x20xf32>
    %93 = arith.mulf %88, %92 : vector<1x20xf32>
    %94 = vector.extract_strided_slice %22 {offsets = [4, 0], sizes = [1, 80], strides = [1, 1]} : vector<8x80xf32> to vector<1x80xf32>
    %cst_32 = arith.constant dense<0.000000e+00> : vector<1x80xf32>
    %95 = tpu.matmul %93, %23, %cst_32 {dimension_numbers = #tpu.dot_dimension_numbers<[1], [0], [0], [1], [0, 0, 1, 1], [], []>} : vector<1x20xf32>, vector<20x80xf32>, vector<1x80xf32> -> vector<1x80xf32>
    %96 = arith.addf %94, %95 : vector<1x80xf32>
    %97 = math.tanh %96 : vector<1x80xf32>
    %cst_33 = arith.constant 5.000000e-01 : f32
    %98 = vector.broadcast %cst_33 : f32 to vector<1x80xf32>
    %99 = arith.mulf %98, %97 : vector<1x80xf32>
    %cst_34 = arith.constant 5.000000e-01 : f32
    %100 = vector.broadcast %cst_34 : f32 to vector<1x80xf32>
    %101 = arith.addf %99, %100 : vector<1x80xf32>
    %102 = vector.extract_strided_slice %101 {offsets = [0, 0], sizes = [1, 20], strides = [1, 1]} : vector<1x80xf32> to vector<1x20xf32>
    %103 = vector.extract_strided_slice %101 {offsets = [0, 20], sizes = [1, 20], strides = [1, 1]} : vector<1x80xf32> to vector<1x20xf32>
    %104 = vector.extract_strided_slice %97 {offsets = [0, 40], sizes = [1, 20], strides = [1, 1]} : vector<1x80xf32> to vector<1x20xf32>
    %105 = vector.extract_strided_slice %101 {offsets = [0, 60], sizes = [1, 20], strides = [1, 1]} : vector<1x80xf32> to vector<1x20xf32>
    %106 = arith.mulf %103, %91 : vector<1x20xf32>
    %107 = arith.mulf %102, %104 : vector<1x20xf32>
    %108 = arith.addf %106, %107 : vector<1x20xf32>
    %109 = math.tanh %108 : vector<1x20xf32>
    %110 = arith.mulf %105, %109 : vector<1x20xf32>
    %111 = vector.extract_strided_slice %22 {offsets = [5, 0], sizes = [1, 80], strides = [1, 1]} : vector<8x80xf32> to vector<1x80xf32>
    %cst_35 = arith.constant dense<0.000000e+00> : vector<1x80xf32>
    %112 = tpu.matmul %110, %23, %cst_35 {dimension_numbers = #tpu.dot_dimension_numbers<[1], [0], [0], [1], [0, 0, 1, 1], [], []>} : vector<1x20xf32>, vector<20x80xf32>, vector<1x80xf32> -> vector<1x80xf32>
    %113 = arith.addf %111, %112 : vector<1x80xf32>
    %114 = math.tanh %113 : vector<1x80xf32>
    %cst_36 = arith.constant 5.000000e-01 : f32
    %115 = vector.broadcast %cst_36 : f32 to vector<1x80xf32>
    %116 = arith.mulf %115, %114 : vector<1x80xf32>
    %cst_37 = arith.constant 5.000000e-01 : f32
    %117 = vector.broadcast %cst_37 : f32 to vector<1x80xf32>
    %118 = arith.addf %116, %117 : vector<1x80xf32>
    %119 = vector.extract_strided_slice %118 {offsets = [0, 0], sizes = [1, 20], strides = [1, 1]} : vector<1x80xf32> to vector<1x20xf32>
    %120 = vector.extract_strided_slice %118 {offsets = [0, 20], sizes = [1, 20], strides = [1, 1]} : vector<1x80xf32> to vector<1x20xf32>
    %121 = vector.extract_strided_slice %114 {offsets = [0, 40], sizes = [1, 20], strides = [1, 1]} : vector<1x80xf32> to vector<1x20xf32>
    %122 = vector.extract_strided_slice %118 {offsets = [0, 60], sizes = [1, 20], strides = [1, 1]} : vector<1x80xf32> to vector<1x20xf32>
    %123 = arith.mulf %120, %108 : vector<1x20xf32>
    %124 = arith.mulf %119, %121 : vector<1x20xf32>
    %125 = arith.addf %123, %124 : vector<1x20xf32>
    %126 = math.tanh %125 : vector<1x20xf32>
    %127 = arith.mulf %122, %126 : vector<1x20xf32>
    %128 = vector.extract_strided_slice %22 {offsets = [6, 0], sizes = [1, 80], strides = [1, 1]} : vector<8x80xf32> to vector<1x80xf32>
    %cst_38 = arith.constant dense<0.000000e+00> : vector<1x80xf32>
    %129 = tpu.matmul %127, %23, %cst_38 {dimension_numbers = #tpu.dot_dimension_numbers<[1], [0], [0], [1], [0, 0, 1, 1], [], []>} : vector<1x20xf32>, vector<20x80xf32>, vector<1x80xf32> -> vector<1x80xf32>
    %130 = arith.addf %128, %129 : vector<1x80xf32>
    %131 = math.tanh %130 : vector<1x80xf32>
    %cst_39 = arith.constant 5.000000e-01 : f32
    %132 = vector.broadcast %cst_39 : f32 to vector<1x80xf32>
    %133 = arith.mulf %132, %131 : vector<1x80xf32>
    %cst_40 = arith.constant 5.000000e-01 : f32
    %134 = vector.broadcast %cst_40 : f32 to vector<1x80xf32>
    %135 = arith.addf %133, %134 : vector<1x80xf32>
    %136 = vector.extract_strided_slice %135 {offsets = [0, 0], sizes = [1, 20], strides = [1, 1]} : vector<1x80xf32> to vector<1x20xf32>
    %137 = vector.extract_strided_slice %135 {offsets = [0, 20], sizes = [1, 20], strides = [1, 1]} : vector<1x80xf32> to vector<1x20xf32>
    %138 = vector.extract_strided_slice %131 {offsets = [0, 40], sizes = [1, 20], strides = [1, 1]} : vector<1x80xf32> to vector<1x20xf32>
    %139 = vector.extract_strided_slice %135 {offsets = [0, 60], sizes = [1, 20], strides = [1, 1]} : vector<1x80xf32> to vector<1x20xf32>
    %140 = arith.mulf %137, %125 : vector<1x20xf32>
    %141 = arith.mulf %136, %138 : vector<1x20xf32>
    %142 = arith.addf %140, %141 : vector<1x20xf32>
    %143 = math.tanh %142 : vector<1x20xf32>
    %144 = arith.mulf %139, %143 : vector<1x20xf32>
    %145 = vector.extract_strided_slice %22 {offsets = [7, 0], sizes = [1, 80], strides = [1, 1]} : vector<8x80xf32> to vector<1x80xf32>
    %cst_41 = arith.constant dense<0.000000e+00> : vector<1x80xf32>
    %146 = tpu.matmul %144, %23, %cst_41 {dimension_numbers = #tpu.dot_dimension_numbers<[1], [0], [0], [1], [0, 0, 1, 1], [], []>} : vector<1x20xf32>, vector<20x80xf32>, vector<1x80xf32> -> vector<1x80xf32>
    %147 = arith.addf %145, %146 : vector<1x80xf32>
    %148 = math.tanh %147 : vector<1x80xf32>
    %cst_42 = arith.constant 5.000000e-01 : f32
    %149 = vector.broadcast %cst_42 : f32 to vector<1x80xf32>
    %150 = arith.mulf %149, %148 : vector<1x80xf32>
    %cst_43 = arith.constant 5.000000e-01 : f32
    %151 = vector.broadcast %cst_43 : f32 to vector<1x80xf32>
    %152 = arith.addf %150, %151 : vector<1x80xf32>
    %153 = vector.extract_strided_slice %152 {offsets = [0, 0], sizes = [1, 20], strides = [1, 1]} : vector<1x80xf32> to vector<1x20xf32>
    %154 = vector.extract_strided_slice %152 {offsets = [0, 20], sizes = [1, 20], strides = [1, 1]} : vector<1x80xf32> to vector<1x20xf32>
    %155 = vector.extract_strided_slice %148 {offsets = [0, 40], sizes = [1, 20], strides = [1, 1]} : vector<1x80xf32> to vector<1x20xf32>
    %156 = vector.extract_strided_slice %152 {offsets = [0, 60], sizes = [1, 20], strides = [1, 1]} : vector<1x80xf32> to vector<1x20xf32>
    %157 = arith.mulf %154, %142 : vector<1x20xf32>
    %158 = arith.mulf %153, %155 : vector<1x20xf32>
    %159 = arith.addf %157, %158 : vector<1x20xf32>
    %160 = math.tanh %159 : vector<1x20xf32>
    %161 = arith.mulf %156, %160 : vector<1x20xf32>
    %cst_44 = arith.constant 0.000000e+00 : f32
    %162 = vector.broadcast %cst_44 : f32 to vector<8x128xf32>
    %c16 = arith.constant 16 : index
    %c0_45 = arith.constant 0 : index
    %163 = vector.load %arg7[%c16, %c0_45] : memref<24x128xf32, #tpu.memory_space<vmem>>, vector<8x128xf32>
    tpu.vector_store %arg7[%c16, %c0_45], %162 {strides = array<i32>} : memref<24x128xf32, #tpu.memory_space<vmem>>, vector<8x128xf32>,
    %c16_46 = arith.constant 16 : index
    %c0_47 = arith.constant 0 : index
    %164 = vector.load %arg7[%c16_46, %c0_47] : memref<24x128xf32, #tpu.memory_space<vmem>>, vector<1x20xf32>
    tpu.vector_store %arg7[%c16_46, %c0_47], %161 {strides = array<i32>} : memref<24x128xf32, #tpu.memory_space<vmem>>, vector<1x20xf32>,
    %c17 = arith.constant 17 : index
    %c0_48 = arith.constant 0 : index
    %165 = vector.load %arg7[%c17, %c0_48] : memref<24x128xf32, #tpu.memory_space<vmem>>, vector<1x20xf32>
    tpu.vector_store %arg7[%c17, %c0_48], %159 {strides = array<i32>} : memref<24x128xf32, #tpu.memory_space<vmem>>, vector<1x20xf32>,
    return
  }
}

</mosaic_0001>

<llo_original>
// kernel: tpu_custom_call.1
$region0: #{tpu_custom_call.1}
  #allocation0 [shape = 'u32[]', space=smem, size = 0x4, offset = 0x4, fixed_abs, tag = 'smem constant byte address 0x4 - core index']
  #allocation1 [shape = 'u32[144,128]{1,0:T(1,128)}', space=vmem, size = 0x12000, scoped, tag = 'internal scratch']
  %s0 = inlined_call_operand.hbm [shape: f32[8,40], index: 0, kind: input, shape index: {}]
  %s1 = inlined_call_operand.hbm [shape: f32[16,20], index: 1, kind: input, shape index: {}]
  %s2 = inlined_call_operand.hbm [shape: f32[40,80], index: 2, kind: input, shape index: {}]
  %s3 = inlined_call_operand.hbm [shape: f32[20,80], index: 3, kind: input, shape index: {}]
  %s4 = inlined_call_operand.vmem [shape: f32[1,80], index: 4, kind: input, shape index: {}]
  %s5 = inlined_call_operand.hbm [shape: f32[20,128], index: 5, kind: input, shape index: {}]
  %s6 = inlined_call_operand.vmem [shape: f32[1,128], index: 6, kind: input, shape index: {}]
  %s7 = inlined_call_operand.hbm [shape: f32[24,128], index: 7, kind: output, shape index: {}]
  %s8 = sld [smem:[#allocation0]]
  $region58: #{tpu_custom_call.1} parent=0
    _
  %s10 = ssub.s32 1, %s8
  %s11 = scalar_select 0, %s10, %s8
  $region1: #{tpu_custom_call.1} parent=0
    #allocation2 [shape = 'u8[4096]{0}', space=vmem, size = 0x1000, scoped, tag = 'input window, operand 0, single buffered']
    #allocation3 [shape = 's32[1]{0}', space=sflag, size = 0x4, scoped, tag = 'scoped memory for tpu_custom_call.1']
    #allocation4 [shape = 's32[1]{0}', space=sflag, size = 0x4, scoped, tag = 'scoped memory for tpu_custom_call.1']
    #allocation5 [shape = 'u8[8192]{0}', space=vmem, size = 0x2000, scoped, tag = 'input window, operand 1, single buffered']
    #allocation6 [shape = 's32[1]{0}', space=sflag, size = 0x4, scoped, tag = 'scoped memory for tpu_custom_call.1']
    #allocation7 [shape = 'u8[20480]{0}', space=vmem, size = 0x5000, scoped, tag = 'input window, operand 2, single buffered']
    #allocation8 [shape = 'u8[12288]{0}', space=vmem, size = 0x3000, scoped, tag = 'input window, operand 3, single buffered']
    #allocation9 [shape = 's32[1]{0}', space=sflag, size = 0x4, scoped, tag = 'scoped memory for tpu_custom_call.1']
    #allocation10 [shape = 'u8[12288]{0}', space=vmem, size = 0x3000, scoped, tag = 'input window, operand 5, single buffered']
    #allocation11 [shape = 'u8[12288]{0}', space=vmem, size = 0x3000, scoped, tag = 'output window, operand 0, single buffered']
    %12 = vsyncpa [#allocation3], 0
    %13 = vsyncpa [#allocation6], 0
    %14 = vsyncpa [#allocation9], 0
    %15 = vsyncpa [#allocation4], 0
    // Predicated region
    $region2: #{tpu_custom_call.1} parent=1 // pred_check
      _
    $region3: #{tpu_custom_call.1} parent=1 // pred_check_branch
      %17 = sbr.rel (0) target = $region5
    $region4: #{tpu_custom_call.1} parent=1 // pred_region
      %s19 = ssub.s32 128, 128
      %20 = vsyncadd [#allocation3], %s19
      %s22 = sshll.u32 [#allocation2], 4
      %s23 = int_to_ptr.vmem [resolvable:$true] %s22
      %25 = dma.hbm_to_vmem [thread:$0]  %s0, 128, %s23, [#allocation3]
    $region5: #{tpu_custom_call.1} parent=1 // pred_fallthru
      _
    // Predicated region
    $region6: #{tpu_custom_call.1} parent=1 // pred_check
      _
    $region7: #{tpu_custom_call.1} parent=1 // pred_check_branch
      %27 = sbr.rel (0) target = $region9
    $region8: #{tpu_custom_call.1} parent=1 // pred_region
      %s29 = ssub.s32 256, 256
      %30 = vsyncadd [#allocation6], %s29
      %s31 = sshll.u32 [#allocation5], 4
      %s32 = int_to_ptr.vmem [resolvable:$true] %s31
      %37 = dma.hbm_to_vmem [thread:$0]  %s1, 256, %s32, [#allocation6], 128, 128, 8
    $region9: #{tpu_custom_call.1} parent=1 // pred_fallthru
      _
    // Predicated region
    $region10: #{tpu_custom_call.1} parent=1 // pred_check
      _
    $region11: #{tpu_custom_call.1} parent=1 // pred_check_branch
      %39 = sbr.rel (0) target = $region13
    $region12: #{tpu_custom_call.1} parent=1 // pred_region
      %s41 = ssub.s32 640, 640
      %42 = vsyncadd [#allocation6], %s41
      %s43 = sshll.u32 [#allocation7], 4
      %s44 = int_to_ptr.vmem [resolvable:$true] %s43
      %49 = dma.hbm_to_vmem [thread:$0]  %s2, 640, %s44, [#allocation6], 128, 128, 8
    $region13: #{tpu_custom_call.1} parent=1 // pred_fallthru
      _
    // Predicated region
    $region14: #{tpu_custom_call.1} parent=1 // pred_check
      _
    $region15: #{tpu_custom_call.1} parent=1 // pred_check_branch
      %51 = sbr.rel (0) target = $region17
    $region16: #{tpu_custom_call.1} parent=1 // pred_region
      %s53 = ssub.s32 384, 384
      %54 = vsyncadd [#allocation9], %s53
      %s55 = sshll.u32 [#allocation8], 4
      %s56 = int_to_ptr.vmem [resolvable:$true] %s55
      %61 = dma.hbm_to_vmem [thread:$0]  %s3, 384, %s56, [#allocation9], 128, 128, 8
    $region17: #{tpu_custom_call.1} parent=1 // pred_fallthru
      _
    // Predicated region
    $region18: #{tpu_custom_call.1} parent=1 // pred_check
      _
    $region19: #{tpu_custom_call.1} parent=1 // pred_check_branch
      %63 = sbr.rel (0) target = $region21
    $region20: #{tpu_custom_call.1} parent=1 // pred_region
      _
    $region21: #{tpu_custom_call.1} parent=1 // pred_fallthru
      _
    // Predicated region
    $region22: #{tpu_custom_call.1} parent=1 // pred_check
      _
    $region23: #{tpu_custom_call.1} parent=1 // pred_check_branch
      %65 = sbr.rel (0) target = $region25
    $region24: #{tpu_custom_call.1} parent=1 // pred_region
      %s67 = ssub.s32 384, 384
      %68 = vsyncadd [#allocation9], %s67
      %s69 = sshll.u32 [#allocation10], 4
      %s70 = int_to_ptr.vmem [resolvable:$true] %s69
      %75 = dma.hbm_to_vmem [thread:$0]  %s5, 384, %s70, [#allocation9], 128, 128, 8
    $region25: #{tpu_custom_call.1} parent=1 // pred_fallthru
      _
    // Predicated region
    $region26: #{tpu_custom_call.1} parent=1 // pred_check
      _
    $region27: #{tpu_custom_call.1} parent=1 // pred_check_branch
      %77 = sbr.rel (0) target = $region29
    $region28: #{tpu_custom_call.1} parent=1 // pred_region
      _
    $region29: #{tpu_custom_call.1} parent=1 // pred_fallthru
      _
    // Predicated region
    $region30: #{tpu_custom_call.1} parent=1 // pred_check
      _
    $region31: #{tpu_custom_call.1} parent=1 // pred_check_branch
      %79 = sbr.rel (0) target = $region33
    $region32: #{tpu_custom_call.1} parent=1 // pred_region
      %80 = dma.done [#allocation3], 128
    $region33: #{tpu_custom_call.1} parent=1 // pred_fallthru
      _
    // Predicated region
    $region34: #{tpu_custom_call.1} parent=1 // pred_check
      _
    $region35: #{tpu_custom_call.1} parent=1 // pred_check_branch
      %82 = sbr.rel (0) target = $region37
    $region36: #{tpu_custom_call.1} parent=1 // pred_region
      %83 = dma.done [#allocation6], 256
    $region37: #{tpu_custom_call.1} parent=1 // pred_fallthru
      _
    // Predicated region
    $region38: #{tpu_custom_call.1} parent=1 // pred_check
      _
    $region39: #{tpu_custom_call.1} parent=1 // pred_check_branch
      %85 = sbr.rel (0) target = $region41
    $region40: #{tpu_custom_call.1} parent=1 // pred_region
      %86 = dma.done [#allocation6], 640
    $region41: #{tpu_custom_call.1} parent=1 // pred_fallthru
      _
    // Predicated region
    $region42: #{tpu_custom_call.1} parent=1 // pred_check
      _
    $region43: #{tpu_custom_call.1} parent=1 // pred_check_branch
      %88 = sbr.rel (0) target = $region45
    $region44: #{tpu_custom_call.1} parent=1 // pred_region
      %89 = dma.done [#allocation9], 384
    $region45: #{tpu_custom_call.1} parent=1 // pred_fallthru
      _
    // Predicated region
    $region46: #{tpu_custom_call.1} parent=1 // pred_check
      _
    $region47: #{tpu_custom_call.1} parent=1 // pred_check_branch
      %91 = sbr.rel (0) target = $region49
    $region48: #{tpu_custom_call.1} parent=1 // pred_region
      %92 = dma.done [#allocation9], 384
    $region49: #{tpu_custom_call.1} parent=1 // pred_fallthru
      _
    %v93 = vld [vmem:[#allocation5] sm:$0xff]
    %v94 = vld [vmem:[#allocation5 + $0x8] sm:$0xff]
    %v95 = vld [vmem:[#allocation10] sm:$0xff]
    %v96 = vld [vmem:[#allocation10 + $0x8] sm:$0xff]
    %v97 = vld [vmem:[#allocation10 + $0x10] sm:$0xf]
    %v98 = vld [vmem:[%s6] sm:$0x1]
    %v100 = vlaneseq
    %v101 = vshrl.u32 %v100, 7
    %v102 = vsub.s32 0, %v101
    %v103 = vrot.slane %v98, %v102
    %vm105 = vcmask 162816
    %v107 = vsel %vm105, %v93, 0
    %v110 = vsel %vm105, %v94, 0
    %vm112 = vcmask 1043456
    %v114 = vsel %vm112, %v97, 0
    %116 = vmatprep.subr.mxu0 0.0
    %117 = vmatpush1.msra.mxu0 %v95
    %118 = vmatprep.subr.mxu0 0.0
    %119 = vmatpush1.msra.mxu0 %v96
    %120 = vmatprep.subr.mxu0 0.0
    %121 = vmatpush1.msra.mxu0 %v114
    %122 = vmatprep.subr.mxu0 0.0
    %123 = vmatpush1.msra.mxu0 0.0
    %124 = vmatprep.subr.mxu0 0.0
    %125 = vmatpush1.msra.mxu0 0.0
    %126 = vmatprep.subr.mxu0 0.0
    %127 = vmatpush1.msra.mxu0 0.0
    %128 = vmatprep.subr.mxu0 0.0
    %129 = vmatpush1.msra.mxu0 0.0
    %130 = vmatprep.subr.mxu0 0.0
    %131 = vmatpush1.msra.mxu0 0.0
    %132 = vmatprep.subr.mxu0 0.0
    %133 = vmatpush1.msra.mxu0 0.0
    %134 = vmatprep.subr.mxu0 0.0
    %135 = vmatpush1.msra.mxu0 0.0
    %136 = vmatprep.subr.mxu0 0.0
    %137 = vmatpush1.msra.mxu0 0.0
    %138 = vmatprep.subr.mxu0 0.0
    %139 = vmatpush1.msra.mxu0 0.0
    %140 = vmatprep.subr.mxu0 0.0
    %141 = vmatpush1.msra.mxu0 0.0
    %142 = vmatprep.subr.mxu0 0.0
    %143 = vmatpush1.msra.mxu0 0.0
    %144 = vmatprep.subr.mxu0 0.0
    %145 = vmatpush1.msra.mxu0 0.0
    %146 = vmatprep.subr.mxu0 0.0
    %147 = vmatpush1.msra.mxu0 0.0
    %148 = vmatprep.subr.mxu0 0.0
    %149 = vmatpush1.msra.mxu0 0.0
    %150 = vmatprep.subr.mxu0 0.0
    %151 = vmatpush1.msra.mxu0 0.0
    %152 = vmatprep.subr.mxu0 0.0
    %153 = vmatpush1.msra.mxu0 0.0
    %154 = vmatprep.subr.mxu0 0.0
    %155 = vmatpush1.msra.mxu0 0.0
    %156 = vmatprep.subr.mxu0 0.0
    %157 = vmatpush1.msra.mxu0 0.0
    %158 = vmatprep.subr.mxu0 0.0
    %159 = vmatpush1.msra.mxu0 0.0
    %160 = vmatprep.subr.mxu0 0.0
    %161 = vmatpush1.msra.mxu0 0.0
    %162 = vmatprep.subr.mxu0 0.0
    %163 = vmatpush1.msra.mxu0 0.0
    %164 = vmatprep.subr.mxu0 0.0
    %165 = vmatpush1.msra.mxu0 0.0
    %166 = vmatprep.subr.mxu0 0.0
    %167 = vmatpush1.msra.mxu0 0.0
    %168 = vmatprep.subr.mxu0 0.0
    %169 = vmatpush1.msra.mxu0 0.0
    %170 = vmatprep.subr.mxu0 0.0
    %171 = vmatpush1.msra.mxu0 0.0
    %172 = vmatprep.subr.mxu0 0.0
    %173 = vmatpush1.msra.mxu0 0.0
    %174 = vmatprep.subr.mxu0 0.0
    %175 = vmatpush1.msra.mxu0 0.0
    %176 = vmatprep.subr.mxu0 0.0
    %177 = vmatpush1.msra.mxu0 0.0
    %178 = vmatprep.subr.mxu0 0.0
    %179 = vmatpush1.msra.mxu0 0.0
    %180 = vmatprep.mubr.f32.mxu0 0.0
    %181 = vmatmul.mubr.f32.gmra.mrb[0].mxu0 %v107
    %v182 = vpop.f32.mrb[0].mxu0
    %v183 = vadd.f32 %v103, %v182
    %v184 = vpop.f32.mrb[0].mxu0
    %185 = vmatprep.mubr.f32.mxu0 0.0
    %186 = vmatmul.mubr.f32.gmra.mrb[0].mxu0 %v110
    %v187 = vpop.f32.mrb[0].mxu0
    %v188 = vadd.f32 %v103, %v187
    %v189 = vpop.f32.mrb[0].mxu0
    %190 = vdwg.mxu0
    %v191 = vmax.f32 %v183, %v188
    %v192 = vrot.slane %v191, 4
    %v193 = vmax.f32 %v191, %v192
    %v194 = vrot.slane %v193, 2
    %v195 = vmax.f32 %v193, %v194
    %v196 = vrot.slane %v195, 1
    %v197 = vmax.f32 %v195, %v196
    %v198 = vsub.f32 %v183, %v197
    %v199 = vsub.f32 %v188, %v197
    %v200 = vmul.f32 %v198, 1.442695
    %v201 = vpow.pop %v200
    %v202 = vmul.f32 %v199, 1.442695
    %v203 = vpow.pop %v202
    %v204 = vadd.f32 %v201, %v203
    %v205 = vrot.slane %v204, 4
    %v206 = vadd.f32 %v204, %v205
    %v207 = vrot.slane %v206, 2
    %v208 = vadd.f32 %v206, %v207
    %v209 = vrot.slane %v208, 1
    %v210 = vadd.f32 %v208, %v209
    %v211 = vlog2.pop %v210
    %v212 = vmul.f32 %v211, 0.6931472
    %v213 = vsub.f32 %v198, %v212
    %v214 = vsub.f32 %v199, %v212
    %215 = vst [vmem:[#allocation11] sm:$0xff] %v213
    %216 = vst [vmem:[#allocation11 + $0x8] sm:$0xff] %v214
    %v217 = vld [vmem:[#allocation2] sm:$0xff]
    %v218 = vld [vmem:[#allocation7] sm:$0xff]
    %v219 = vld [vmem:[#allocation7 + $0x8] sm:$0xff]
    %v220 = vld [vmem:[#allocation7 + $0x10] sm:$0xff]
    %v221 = vld [vmem:[#allocation7 + $0x18] sm:$0xff]
    %v222 = vld [vmem:[#allocation7 + $0x20] sm:$0xff]
    %v223 = vld [vmem:[%s4] sm:$0x1]
    %v225 = vlaneseq
    %v226 = vshrl.u32 %v225, 7
    %v227 = vsub.s32 0, %v226
    %v228 = vrot.slane %v223, %v227
    %vm230 = vcmask 326656
    %v232 = vsel %vm230, %v217, 0
    %234 = vmatprep.subr.mxu0 0.0
    %235 = vmatpush1.msra.mxu0 %v218
    %236 = vmatprep.subr.mxu0 0.0
    %237 = vmatpush1.msra.mxu0 %v219
    %238 = vmatprep.subr.mxu0 0.0
    %239 = vmatpush1.msra.mxu0 %v220
    %240 = vmatprep.subr.mxu0 0.0
    %241 = vmatpush1.msra.mxu0 %v221
    %242 = vmatprep.subr.mxu0 0.0
    %243 = vmatpush1.msra.mxu0 %v222
    %244 = vmatprep.subr.mxu0 0.0
    %245 = vmatpush1.msra.mxu0 0.0
    %246 = vmatprep.subr.mxu0 0.0
    %247 = vmatpush1.msra.mxu0 0.0
    %248 = vmatprep.subr.mxu0 0.0
    %249 = vmatpush1.msra.mxu0 0.0
    %250 = vmatprep.subr.mxu0 0.0
    %251 = vmatpush1.msra.mxu0 0.0
    %252 = vmatprep.subr.mxu0 0.0
    %253 = vmatpush1.msra.mxu0 0.0
    %254 = vmatprep.subr.mxu0 0.0
    %255 = vmatpush1.msra.mxu0 0.0
    %256 = vmatprep.subr.mxu0 0.0
    %257 = vmatpush1.msra.mxu0 0.0
    %258 = vmatprep.subr.mxu0 0.0
    %259 = vmatpush1.msra.mxu0 0.0
    %260 = vmatprep.subr.mxu0 0.0
    %261 = vmatpush1.msra.mxu0 0.0
    %262 = vmatprep.subr.mxu0 0.0
    %263 = vmatpush1.msra.mxu0 0.0
    %264 = vmatprep.subr.mxu0 0.0
    %265 = vmatpush1.msra.mxu0 0.0
    %266 = vmatprep.subr.mxu0 0.0
    %267 = vmatpush1.msra.mxu0 0.0
    %268 = vmatprep.subr.mxu0 0.0
    %269 = vmatpush1.msra.mxu0 0.0
    %270 = vmatprep.subr.mxu0 0.0
    %271 = vmatpush1.msra.mxu0 0.0
    %272 = vmatprep.subr.mxu0 0.0
    %273 = vmatpush1.msra.mxu0 0.0
    %274 = vmatprep.subr.mxu0 0.0
    %275 = vmatpush1.msra.mxu0 0.0
    %276 = vmatprep.subr.mxu0 0.0
    %277 = vmatpush1.msra.mxu0 0.0
    %278 = vmatprep.subr.mxu0 0.0
    %279 = vmatpush1.msra.mxu0 0.0
    %280 = vmatprep.subr.mxu0 0.0
    %281 = vmatpush1.msra.mxu0 0.0
    %282 = vmatprep.subr.mxu0 0.0
    %283 = vmatpush1.msra.mxu0 0.0
    %284 = vmatprep.subr.mxu0 0.0
    %285 = vmatpush1.msra.mxu0 0.0
    %286 = vmatprep.subr.mxu0 0.0
    %287 = vmatpush1.msra.mxu0 0.0
    %288 = vmatprep.subr.mxu0 0.0
    %289 = vmatpush1.msra.mxu0 0.0
    %290 = vmatprep.subr.mxu0 0.0
    %291 = vmatpush1.msra.mxu0 0.0
    %292 = vmatprep.subr.mxu0 0.0
    %293 = vmatpush1.msra.mxu0 0.0
    %294 = vmatprep.subr.mxu0 0.0
    %295 = vmatpush1.msra.mxu0 0.0
    %296 = vmatprep.subr.mxu0 0.0
    %297 = vmatpush1.msra.mxu0 0.0
    %298 = vmatprep.mubr.f32.mxu0 0.0
    %299 = vmatmul.mubr.f32.gmra.mrb[0].mxu0 %v232
    %v300 = vpop.f32.mrb[0].mxu0
    %v301 = vadd.f32 %v228, %v300
    %v302 = vpop.f32.mrb[0].mxu0
    %303 = vdwg.mxu0
    %v304 = vld [vmem:[#allocation8] sm:$0xff]
    %v305 = vld [vmem:[#allocation8 + $0x8] sm:$0xff]
    %v306 = vld [vmem:[#allocation8 + $0x10] sm:$0xf]
    %v308 = vsel %vm105, 0.0, 0
    %v311 = vsel %vm112, %v306, 0
    %313 = vmatprep.subr.mxu0 0.0
    %314 = vmatpush1.msra.mxu0 %v304
    %315 = vmatprep.subr.mxu0 0.0
    %316 = vmatpush1.msra.mxu0 %v305
    %317 = vmatprep.subr.mxu0 0.0
    %318 = vmatpush1.msra.mxu0 %v311
    %319 = vmatprep.subr.mxu0 0.0
    %320 = vmatpush1.msra.mxu0 0.0
    %321 = vmatprep.subr.mxu0 0.0
    %322 = vmatpush1.msra.mxu0 0.0
    %323 = vmatprep.subr.mxu0 0.0
    %324 = vmatpush1.msra.mxu0 0.0
    %325 = vmatprep.subr.mxu0 0.0
    %326 = vmatpush1.msra.mxu0 0.0
    %327 = vmatprep.subr.mxu0 0.0
    %328 = vmatpush1.msra.mxu0 0.0
    %329 = vmatprep.subr.mxu0 0.0
    %330 = vmatpush1.msra.mxu0 0.0
    %331 = vmatprep.subr.mxu0 0.0
    %332 = vmatpush1.msra.mxu0 0.0
    %333 = vmatprep.subr.mxu0 0.0
    %334 = vmatpush1.msra.mxu0 0.0
    %335 = vmatprep.subr.mxu0 0.0
    %336 = vmatpush1.msra.mxu0 0.0
    %337 = vmatprep.subr.mxu0 0.0
    %338 = vmatpush1.msra.mxu0 0.0
    %339 = vmatprep.subr.mxu0 0.0
    %340 = vmatpush1.msra.mxu0 0.0
    %341 = vmatprep.subr.mxu0 0.0
    %342 = vmatpush1.msra.mxu0 0.0
    %343 = vmatprep.subr.mxu0 0.0
    %344 = vmatpush1.msra.mxu0 0.0
    %345 = vmatprep.subr.mxu0 0.0
    %346 = vmatpush1.msra.mxu0 0.0
    %347 = vmatprep.subr.mxu0 0.0
    %348 = vmatpush1.msra.mxu0 0.0
    %349 = vmatprep.subr.mxu0 0.0
    %350 = vmatpush1.msra.mxu0 0.0
    %351 = vmatprep.subr.mxu0 0.0
    %352 = vmatpush1.msra.mxu0 0.0
    %353 = vmatprep.subr.mxu0 0.0
    %354 = vmatpush1.msra.mxu0 0.0
    %355 = vmatprep.subr.mxu0 0.0
    %356 = vmatpush1.msra.mxu0 0.0
    %357 = vmatprep.subr.mxu0 0.0
    %358 = vmatpush1.msra.mxu0 0.0
    %359 = vmatprep.subr.mxu0 0.0
    %360 = vmatpush1.msra.mxu0 0.0
    %361 = vmatprep.subr.mxu0 0.0
    %362 = vmatpush1.msra.mxu0 0.0
    %363 = vmatprep.subr.mxu0 0.0
    %364 = vmatpush1.msra.mxu0 0.0
    %365 = vmatprep.subr.mxu0 0.0
    %366 = vmatpush1.msra.mxu0 0.0
    %367 = vmatprep.subr.mxu0 0.0
    %368 = vmatpush1.msra.mxu0 0.0
    %369 = vmatprep.subr.mxu0 0.0
    %370 = vmatpush1.msra.mxu0 0.0
    %371 = vmatprep.subr.mxu0 0.0
    %372 = vmatpush1.msra.mxu0 0.0
    %373 = vmatprep.subr.mxu0 0.0
    %374 = vmatpush1.msra.mxu0 0.0
    %375 = vmatprep.subr.mxu0 0.0
    %376 = vmatpush1.msra.mxu0 0.0
    %377 = vmatprep.mubr.f32.mxu0 0.0
    %378 = vmatmul.mubr.f32.gmra.mrb[0].mxu0 %v308
    %v379 = vpop.f32.mrb[0].mxu0
    %v380 = vadd.f32 0.0, %v379
    %v381 = vpop.f32.mrb[0].mxu0
    %382 = vdwg.mxu0
    %v383 = vadd.f32 %v301, %v380
    %v384 = vtanh.pop %v383
    %v385 = vmul.f32 %v384, 0.5
    %v386 = vadd.f32 %v385, 0.5
    %v387 = vmul.f32 %v386, 0.0
    %389 = vrot.lane.b32.xlu0 %v384, 88
    %v390 = vpop.permute.xlu0 %389
    %v392 = vmul.f32 %v386, %v390
    %394 = vrot.lane.b32.xlu0 %v392, 20
    %v395 = vpop.permute.xlu0 %394
    %v397 = vadd.f32 %v387, %v395
    %v398 = vtanh.pop %v397
    %400 = vrot.lane.b32.xlu0 %v398, 40
    %v401 = vpop.permute.xlu0 %400
    %v403 = vmul.f32 %v386, %v401
    %405 = vrot.lane.b32.xlu0 %v403, 68
    %v406 = vpop.permute.xlu0 %405
    %v407 = vsel %vm105, %v406, 0
    %409 = vmatprep.subr.mxu0 0.0
    %410 = vmatpush1.msra.mxu0 %v304
    %411 = vmatprep.subr.mxu0 0.0
    %412 = vmatpush1.msra.mxu0 %v305
    %413 = vmatprep.subr.mxu0 0.0
    %414 = vmatpush1.msra.mxu0 %v311
    %415 = vmatprep.subr.mxu0 0.0
    %416 = vmatpush1.msra.mxu0 0.0
    %417 = vmatprep.subr.mxu0 0.0
    %418 = vmatpush1.msra.mxu0 0.0
    %419 = vmatprep.subr.mxu0 0.0
    %420 = vmatpush1.msra.mxu0 0.0
    %421 = vmatprep.subr.mxu0 0.0
    %422 = vmatpush1.msra.mxu0 0.0
    %423 = vmatprep.subr.mxu0 0.0
    %424 = vmatpush1.msra.mxu0 0.0
    %425 = vmatprep.subr.mxu0 0.0
    %426 = vmatpush1.msra.mxu0 0.0
    %427 = vmatprep.subr.mxu0 0.0
    %428 = vmatpush1.msra.mxu0 0.0
    %429 = vmatprep.subr.mxu0 0.0
    %430 = vmatpush1.msra.mxu0 0.0
    %431 = vmatprep.subr.mxu0 0.0
    %432 = vmatpush1.msra.mxu0 0.0
    %433 = vmatprep.subr.mxu0 0.0
    %434 = vmatpush1.msra.mxu0 0.0
    %435 = vmatprep.subr.mxu0 0.0
    %436 = vmatpush1.msra.mxu0 0.0
    %437 = vmatprep.subr.mxu0 0.0
    %438 = vmatpush1.msra.mxu0 0.0
    %439 = vmatprep.subr.mxu0 0.0
    %440 = vmatpush1.msra.mxu0 0.0
    %441 = vmatprep.subr.mxu0 0.0
    %442 = vmatpush1.msra.mxu0 0.0
    %443 = vmatprep.subr.mxu0 0.0
    %444 = vmatpush1.msra.mxu0 0.0
    %445 = vmatprep.subr.mxu0 0.0
    %446 = vmatpush1.msra.mxu0 0.0
    %447 = vmatprep.subr.mxu0 0.0
    %448 = vmatpush1.msra.mxu0 0.0
    %449 = vmatprep.subr.mxu0 0.0
    %450 = vmatpush1.msra.mxu0 0.0
    %451 = vmatprep.subr.mxu0 0.0
    %452 = vmatpush1.msra.mxu0 0.0
    %453 = vmatprep.subr.mxu0 0.0
    %454 = vmatpush1.msra.mxu0 0.0
    %455 = vmatprep.subr.mxu0 0.0
    %456 = vmatpush1.msra.mxu0 0.0
    %457 = vmatprep.subr.mxu0 0.0
    %458 = vmatpush1.msra.mxu0 0.0
    %459 = vmatprep.subr.mxu0 0.0
    %460 = vmatpush1.msra.mxu0 0.0
    %461 = vmatprep.subr.mxu0 0.0
    %462 = vmatpush1.msra.mxu0 0.0
    %463 = vmatprep.subr.mxu0 0.0
    %464 = vmatpush1.msra.mxu0 0.0
    %465 = vmatprep.subr.mxu0 0.0
    %466 = vmatpush1.msra.mxu0 0.0
    %467 = vmatprep.subr.mxu0 0.0
    %468 = vmatpush1.msra.mxu0 0.0
    %469 = vmatprep.subr.mxu0 0.0
    %470 = vmatpush1.msra.mxu0 0.0
    %471 = vmatprep.subr.mxu0 0.0
    %472 = vmatpush1.msra.mxu0 0.0
    %473 = vmatprep.mubr.f32.mxu0 0.0
    %474 = vmatmul.mubr.f32.gmra.mrb[0].mxu0 %v407
    %v475 = vpop.f32.mrb[0].mxu0
    %v476 = vadd.f32 0.0, %v475
    %v477 = vpop.f32.mrb[0].mxu0
    %478 = vdwg.mxu0
    %v480 = vrot.slane %v476, 7
    %v482 = vadd.f32 %v301, %v480
    %v483 = vtanh.pop %v482
    %v484 = vmul.f32 %v483, 0.5
    %v485 = vadd.f32 %v484, 0.5
    %v487 = vrot.slane %v397, 7
    %v489 = vmul.f32 %v485, %v487
    %491 = vrot.lane.b32.xlu0 %v483, 88
    %v492 = vpop.permute.xlu0 %491
    %v494 = vmul.f32 %v485, %v492
    %496 = vrot.lane.b32.xlu0 %v494, 20
    %v497 = vpop.permute.xlu0 %496
    %v499 = vadd.f32 %v489, %v497
    %v500 = vtanh.pop %v499
    %502 = vrot.lane.b32.xlu0 %v500, 40
    %v503 = vpop.permute.xlu0 %502
    %v505 = vmul.f32 %v485, %v503
    %v507 = vrot.slane %v505, 1
    %508 = vrot.lane.b32.xlu0 %v507, 68
    %v509 = vpop.permute.xlu0 %508
    %v510 = vsel %vm105, %v509, 0
    %512 = vmatprep.subr.mxu0 0.0
    %513 = vmatpush1.msra.mxu0 %v304
    %514 = vmatprep.subr.mxu0 0.0
    %515 = vmatpush1.msra.mxu0 %v305
    %516 = vmatprep.subr.mxu0 0.0
    %517 = vmatpush1.msra.mxu0 %v311
    %518 = vmatprep.subr.mxu0 0.0
    %519 = vmatpush1.msra.mxu0 0.0
    %520 = vmatprep.subr.mxu0 0.0
    %521 = vmatpush1.msra.mxu0 0.0
    %522 = vmatprep.subr.mxu0 0.0
    %523 = vmatpush1.msra.mxu0 0.0
    %524 = vmatprep.subr.mxu0 0.0
    %525 = vmatpush1.msra.mxu0 0.0
    %526 = vmatprep.subr.mxu0 0.0
    %527 = vmatpush1.msra.mxu0 0.0
    %528 = vmatprep.subr.mxu0 0.0
    %529 = vmatpush1.msra.mxu0 0.0
    %530 = vmatprep.subr.mxu0 0.0
    %531 = vmatpush1.msra.mxu0 0.0
    %532 = vmatprep.subr.mxu0 0.0
    %533 = vmatpush1.msra.mxu0 0.0
    %534 = vmatprep.subr.mxu0 0.0
    %535 = vmatpush1.msra.mxu0 0.0
    %536 = vmatprep.subr.mxu0 0.0
    %537 = vmatpush1.msra.mxu0 0.0
    %538 = vmatprep.subr.mxu0 0.0
    %539 = vmatpush1.msra.mxu0 0.0
    %540 = vmatprep.subr.mxu0 0.0
    %541 = vmatpush1.msra.mxu0 0.0
    %542 = vmatprep.subr.mxu0 0.0
    %543 = vmatpush1.msra.mxu0 0.0
    %544 = vmatprep.subr.mxu0 0.0
    %545 = vmatpush1.msra.mxu0 0.0
    %546 = vmatprep.subr.mxu0 0.0
    %547 = vmatpush1.msra.mxu0 0.0
    %548 = vmatprep.subr.mxu0 0.0
    %549 = vmatpush1.msra.mxu0 0.0
    %550 = vmatprep.subr.mxu0 0.0
    %551 = vmatpush1.msra.mxu0 0.0
    %552 = vmatprep.subr.mxu0 0.0
    %553 = vmatpush1.msra.mxu0 0.0
    %554 = vmatprep.subr.mxu0 0.0
    %555 = vmatpush1.msra.mxu0 0.0
    %556 = vmatprep.subr.mxu0 0.0
    %557 = vmatpush1.msra.mxu0 0.0
    %558 = vmatprep.subr.mxu0 0.0
    %559 = vmatpush1.msra.mxu0 0.0
    %560 = vmatprep.subr.mxu0 0.0
    %561 = vmatpush1.msra.mxu0 0.0
    %562 = vmatprep.subr.mxu0 0.0
    %563 = vmatpush1.msra.mxu0 0.0
    %564 = vmatprep.subr.mxu0 0.0
    %565 = vmatpush1.msra.mxu0 0.0
    %566 = vmatprep.subr.mxu0 0.0
    %567 = vmatpush1.msra.mxu0 0.0
    %568 = vmatprep.subr.mxu0 0.0
    %569 = vmatpush1.msra.mxu0 0.0
    %570 = vmatprep.subr.mxu0 0.0
    %571 = vmatpush1.msra.mxu0 0.0
    %572 = vmatprep.subr.mxu0 0.0
    %573 = vmatpush1.msra.mxu0 0.0
    %574 = vmatprep.subr.mxu0 0.0
    %575 = vmatpush1.msra.mxu0 0.0
    %576 = vmatprep.mubr.f32.mxu0 0.0
    %577 = vmatmul.mubr.f32.gmra.mrb[0].mxu0 %v510
    %v578 = vpop.f32.mrb[0].mxu0
    %v579 = vadd.f32 0.0, %v578
    %v580 = vpop.f32.mrb[0].mxu0
    %581 = vdwg.mxu0
    %v583 = vrot.slane %v579, 6
    %v585 = vadd.f32 %v301, %v583
    %v586 = vtanh.pop %v585
    %v587 = vmul.f32 %v586, 0.5
    %v588 = vadd.f32 %v587, 0.5
    %v590 = vrot.slane %v499, 7
    %v592 = vmul.f32 %v588, %v590
    %594 = vrot.lane.b32.xlu0 %v586, 88
    %v595 = vpop.permute.xlu0 %594
    %v597 = vmul.f32 %v588, %v595
    %599 = vrot.lane.b32.xlu0 %v597, 20
    %v600 = vpop.permute.xlu0 %599
    %v602 = vadd.f32 %v592, %v600
    %v603 = vtanh.pop %v602
    %605 = vrot.lane.b32.xlu0 %v603, 40
    %v606 = vpop.permute.xlu0 %605
    %v608 = vmul.f32 %v588, %v606
    %v610 = vrot.slane %v608, 2
    %611 = vrot.lane.b32.xlu0 %v610, 68
    %v612 = vpop.permute.xlu0 %611
    %v613 = vsel %vm105, %v612, 0
    %615 = vmatprep.subr.mxu0 0.0
    %616 = vmatpush1.msra.mxu0 %v304
    %617 = vmatprep.subr.mxu0 0.0
    %618 = vmatpush1.msra.mxu0 %v305
    %619 = vmatprep.subr.mxu0 0.0
    %620 = vmatpush1.msra.mxu0 %v311
    %621 = vmatprep.subr.mxu0 0.0
    %622 = vmatpush1.msra.mxu0 0.0
    %623 = vmatprep.subr.mxu0 0.0
    %624 = vmatpush1.msra.mxu0 0.0
    %625 = vmatprep.subr.mxu0 0.0
    %626 = vmatpush1.msra.mxu0 0.0
    %627 = vmatprep.subr.mxu0 0.0
    %628 = vmatpush1.msra.mxu0 0.0
    %629 = vmatprep.subr.mxu0 0.0
    %630 = vmatpush1.msra.mxu0 0.0
    %631 = vmatprep.subr.mxu0 0.0
    %632 = vmatpush1.msra.mxu0 0.0
    %633 = vmatprep.subr.mxu0 0.0
    %634 = vmatpush1.msra.mxu0 0.0
    %635 = vmatprep.subr.mxu0 0.0
    %636 = vmatpush1.msra.mxu0 0.0
    %637 = vmatprep.subr.mxu0 0.0
    %638 = vmatpush1.msra.mxu0 0.0
    %639 = vmatprep.subr.mxu0 0.0
    %640 = vmatpush1.msra.mxu0 0.0
    %641 = vmatprep.subr.mxu0 0.0
    %642 = vmatpush1.msra.mxu0 0.0
    %643 = vmatprep.subr.mxu0 0.0
    %644 = vmatpush1.msra.mxu0 0.0
    %645 = vmatprep.subr.mxu0 0.0
    %646 = vmatpush1.msra.mxu0 0.0
    %647 = vmatprep.subr.mxu0 0.0
    %648 = vmatpush1.msra.mxu0 0.0
    %649 = vmatprep.subr.mxu0 0.0
    %650 = vmatpush1.msra.mxu0 0.0
    %651 = vmatprep.subr.mxu0 0.0
    %652 = vmatpush1.msra.mxu0 0.0
    %653 = vmatprep.subr.mxu0 0.0
    %654 = vmatpush1.msra.mxu0 0.0
    %655 = vmatprep.subr.mxu0 0.0
    %656 = vmatpush1.msra.mxu0 0.0
    %657 = vmatprep.subr.mxu0 0.0
    %658 = vmatpush1.msra.mxu0 0.0
    %659 = vmatprep.subr.mxu0 0.0
    %660 = vmatpush1.msra.mxu0 0.0
    %661 = vmatprep.subr.mxu0 0.0
    %662 = vmatpush1.msra.mxu0 0.0
    %663 = vmatprep.subr.mxu0 0.0
    %664 = vmatpush1.msra.mxu0 0.0
    %665 = vmatprep.subr.mxu0 0.0
    %666 = vmatpush1.msra.mxu0 0.0
    %667 = vmatprep.subr.mxu0 0.0
    %668 = vmatpush1.msra.mxu0 0.0
    %669 = vmatprep.subr.mxu0 0.0
    %670 = vmatpush1.msra.mxu0 0.0
    %671 = vmatprep.subr.mxu0 0.0
    %672 = vmatpush1.msra.mxu0 0.0
    %673 = vmatprep.subr.mxu0 0.0
    %674 = vmatpush1.msra.mxu0 0.0
    %675 = vmatprep.subr.mxu0 0.0
    %676 = vmatpush1.msra.mxu0 0.0
    %677 = vmatprep.subr.mxu0 0.0
    %678 = vmatpush1.msra.mxu0 0.0
    %679 = vmatprep.mubr.f32.mxu0 0.0
    %680 = vmatmul.mubr.f32.gmra.mrb[0].mxu0 %v613
    %v681 = vpop.f32.mrb[0].mxu0
    %v682 = vadd.f32 0.0, %v681
    %v683 = vpop.f32.mrb[0].mxu0
    %684 = vdwg.mxu0
    %v686 = vrot.slane %v682, 5
    %v688 = vadd.f32 %v301, %v686
    %v689 = vtanh.pop %v688
    %v690 = vmul.f32 %v689, 0.5
    %v691 = vadd.f32 %v690, 0.5
    %v693 = vrot.slane %v602, 7
    %v695 = vmul.f32 %v691, %v693
    %697 = vrot.lane.b32.xlu0 %v689, 88
    %v698 = vpop.permute.xlu0 %697
    %v700 = vmul.f32 %v691, %v698
    %702 = vrot.lane.b32.xlu0 %v700, 20
    %v703 = vpop.permute.xlu0 %702
    %v705 = vadd.f32 %v695, %v703
    %v706 = vtanh.pop %v705
    %708 = vrot.lane.b32.xlu0 %v706, 40
    %v709 = vpop.permute.xlu0 %708
    %v711 = vmul.f32 %v691, %v709
    %v713 = vrot.slane %v711, 3
    %714 = vrot.lane.b32.xlu0 %v713, 68
    %v715 = vpop.permute.xlu0 %714
    %v716 = vsel %vm105, %v715, 0
    %718 = vmatprep.subr.mxu0 0.0
    %719 = vmatpush1.msra.mxu0 %v304
    %720 = vmatprep.subr.mxu0 0.0
    %721 = vmatpush1.msra.mxu0 %v305
    %722 = vmatprep.subr.mxu0 0.0
    %723 = vmatpush1.msra.mxu0 %v311
    %724 = vmatprep.subr.mxu0 0.0
    %725 = vmatpush1.msra.mxu0 0.0
    %726 = vmatprep.subr.mxu0 0.0
    %727 = vmatpush1.msra.mxu0 0.0
    %728 = vmatprep.subr.mxu0 0.0
    %729 = vmatpush1.msra.mxu0 0.0
    %730 = vmatprep.subr.mxu0 0.0
    %731 = vmatpush1.msra.mxu0 0.0
    %732 = vmatprep.subr.mxu0 0.0
    %733 = vmatpush1.msra.mxu0 0.0
    %734 = vmatprep.subr.mxu0 0.0
    %735 = vmatpush1.msra.mxu0 0.0
    %736 = vmatprep.subr.mxu0 0.0
    %737 = vmatpush1.msra.mxu0 0.0
    %738 = vmatprep.subr.mxu0 0.0
    %739 = vmatpush1.msra.mxu0 0.0
    %740 = vmatprep.subr.mxu0 0.0
    %741 = vmatpush1.msra.mxu0 0.0
    %742 = vmatprep.subr.mxu0 0.0
    %743 = vmatpush1.msra.mxu0 0.0
    %744 = vmatprep.subr.mxu0 0.0
    %745 = vmatpush1.msra.mxu0 0.0
    %746 = vmatprep.subr.mxu0 0.0
    %747 = vmatpush1.msra.mxu0 0.0
    %748 = vmatprep.subr.mxu0 0.0
    %749 = vmatpush1.msra.mxu0 0.0
    %750 = vmatprep.subr.mxu0 0.0
    %751 = vmatpush1.msra.mxu0 0.0
    %752 = vmatprep.subr.mxu0 0.0
    %753 = vmatpush1.msra.mxu0 0.0
    %754 = vmatprep.subr.mxu0 0.0
    %755 = vmatpush1.msra.mxu0 0.0
    %756 = vmatprep.subr.mxu0 0.0
    %757 = vmatpush1.msra.mxu0 0.0
    %758 = vmatprep.subr.mxu0 0.0
    %759 = vmatpush1.msra.mxu0 0.0
    %760 = vmatprep.subr.mxu0 0.0
    %761 = vmatpush1.msra.mxu0 0.0
    %762 = vmatprep.subr.mxu0 0.0
    %763 = vmatpush1.msra.mxu0 0.0
    %764 = vmatprep.subr.mxu0 0.0
    %765 = vmatpush1.msra.mxu0 0.0
    %766 = vmatprep.subr.mxu0 0.0
    %767 = vmatpush1.msra.mxu0 0.0
    %768 = vmatprep.subr.mxu0 0.0
    %769 = vmatpush1.msra.mxu0 0.0
    %770 = vmatprep.subr.mxu0 0.0
    %771 = vmatpush1.msra.mxu0 0.0
    %772 = vmatprep.subr.mxu0 0.0
    %773 = vmatpush1.msra.mxu0 0.0
    %774 = vmatprep.subr.mxu0 0.0
    %775 = vmatpush1.msra.mxu0 0.0
    %776 = vmatprep.subr.mxu0 0.0
    %777 = vmatpush1.msra.mxu0 0.0
    %778 = vmatprep.subr.mxu0 0.0
    %779 = vmatpush1.msra.mxu0 0.0
    %780 = vmatprep.subr.mxu0 0.0
    %781 = vmatpush1.msra.mxu0 0.0
    %782 = vmatprep.mubr.f32.mxu0 0.0
    %783 = vmatmul.mubr.f32.gmra.mrb[0].mxu0 %v716
    %v784 = vpop.f32.mrb[0].mxu0
    %v785 = vadd.f32 0.0, %v784
    %v786 = vpop.f32.mrb[0].mxu0
    %787 = vdwg.mxu0
    %v789 = vrot.slane %v785, 4
    %v791 = vadd.f32 %v301, %v789
    %v792 = vtanh.pop %v791
    %v793 = vmul.f32 %v792, 0.5
    %v794 = vadd.f32 %v793, 0.5
    %v796 = vrot.slane %v705, 7
    %v798 = vmul.f32 %v794, %v796
    %800 = vrot.lane.b32.xlu0 %v792, 88
    %v801 = vpop.permute.xlu0 %800
    %v803 = vmul.f32 %v794, %v801
    %805 = vrot.lane.b32.xlu0 %v803, 20
    %v806 = vpop.permute.xlu0 %805
    %v808 = vadd.f32 %v798, %v806
    %v809 = vtanh.pop %v808
    %811 = vrot.lane.b32.xlu0 %v809, 40
    %v812 = vpop.permute.xlu0 %811
    %v814 = vmul.f32 %v794, %v812
    %v816 = vrot.slane %v814, 4
    %817 = vrot.lane.b32.xlu0 %v816, 68
    %v818 = vpop.permute.xlu0 %817
    %v819 = vsel %vm105, %v818, 0
    %821 = vmatprep.subr.mxu0 0.0
    %822 = vmatpush1.msra.mxu0 %v304
    %823 = vmatprep.subr.mxu0 0.0
    %824 = vmatpush1.msra.mxu0 %v305
    %825 = vmatprep.subr.mxu0 0.0
    %826 = vmatpush1.msra.mxu0 %v311
    %827 = vmatprep.subr.mxu0 0.0
    %828 = vmatpush1.msra.mxu0 0.0
    %829 = vmatprep.subr.mxu0 0.0
    %830 = vmatpush1.msra.mxu0 0.0
    %831 = vmatprep.subr.mxu0 0.0
    %832 = vmatpush1.msra.mxu0 0.0
    %833 = vmatprep.subr.mxu0 0.0
    %834 = vmatpush1.msra.mxu0 0.0
    %835 = vmatprep.subr.mxu0 0.0
    %836 = vmatpush1.msra.mxu0 0.0
    %837 = vmatprep.subr.mxu0 0.0
    %838 = vmatpush1.msra.mxu0 0.0
    %839 = vmatprep.subr.mxu0 0.0
    %840 = vmatpush1.msra.mxu0 0.0
    %841 = vmatprep.subr.mxu0 0.0
    %842 = vmatpush1.msra.mxu0 0.0
    %843 = vmatprep.subr.mxu0 0.0
    %844 = vmatpush1.msra.mxu0 0.0
    %845 = vmatprep.subr.mxu0 0.0
    %846 = vmatpush1.msra.mxu0 0.0
    %847 = vmatprep.subr.mxu0 0.0
    %848 = vmatpush1.msra.mxu0 0.0
    %849 = vmatprep.subr.mxu0 0.0
    %850 = vmatpush1.msra.mxu0 0.0
    %851 = vmatprep.subr.mxu0 0.0
    %852 = vmatpush1.msra.mxu0 0.0
    %853 = vmatprep.subr.mxu0 0.0
    %854 = vmatpush1.msra.mxu0 0.0
    %855 = vmatprep.subr.mxu0 0.0
    %856 = vmatpush1.msra.mxu0 0.0
    %857 = vmatprep.subr.mxu0 0.0
    %858 = vmatpush1.msra.mxu0 0.0
    %859 = vmatprep.subr.mxu0 0.0
    %860 = vmatpush1.msra.mxu0 0.0
    %861 = vmatprep.subr.mxu0 0.0
    %862 = vmatpush1.msra.mxu0 0.0
    %863 = vmatprep.subr.mxu0 0.0
    %864 = vmatpush1.msra.mxu0 0.0
    %865 = vmatprep.subr.mxu0 0.0
    %866 = vmatpush1.msra.mxu0 0.0
    %867 = vmatprep.subr.mxu0 0.0
    %868 = vmatpush1.msra.mxu0 0.0
    %869 = vmatprep.subr.mxu0 0.0
    %870 = vmatpush1.msra.mxu0 0.0
    %871 = vmatprep.subr.mxu0 0.0
    %872 = vmatpush1.msra.mxu0 0.0
    %873 = vmatprep.subr.mxu0 0.0
    %874 = vmatpush1.msra.mxu0 0.0
    %875 = vmatprep.subr.mxu0 0.0
    %876 = vmatpush1.msra.mxu0 0.0
    %877 = vmatprep.subr.mxu0 0.0
    %878 = vmatpush1.msra.mxu0 0.0
    %879 = vmatprep.subr.mxu0 0.0
    %880 = vmatpush1.msra.mxu0 0.0
    %881 = vmatprep.subr.mxu0 0.0
    %882 = vmatpush1.msra.mxu0 0.0
    %883 = vmatprep.subr.mxu0 0.0
    %884 = vmatpush1.msra.mxu0 0.0
    %885 = vmatprep.mubr.f32.mxu0 0.0
    %886 = vmatmul.mubr.f32.gmra.mrb[0].mxu0 %v819
    %v887 = vpop.f32.mrb[0].mxu0
    %v888 = vadd.f32 0.0, %v887
    %v889 = vpop.f32.mrb[0].mxu0
    %890 = vdwg.mxu0
    %v892 = vrot.slane %v888, 3
    %v894 = vadd.f32 %v301, %v892
    %v895 = vtanh.pop %v894
    %v896 = vmul.f32 %v895, 0.5
    %v897 = vadd.f32 %v896, 0.5
    %v899 = vrot.slane %v808, 7
    %v901 = vmul.f32 %v897, %v899
    %903 = vrot.lane.b32.xlu0 %v895, 88
    %v904 = vpop.permute.xlu0 %903
    %v906 = vmul.f32 %v897, %v904
    %908 = vrot.lane.b32.xlu0 %v906, 20
    %v909 = vpop.permute.xlu0 %908
    %v911 = vadd.f32 %v901, %v909
    %v912 = vtanh.pop %v911
    %914 = vrot.lane.b32.xlu0 %v912, 40
    %v915 = vpop.permute.xlu0 %914
    %v917 = vmul.f32 %v897, %v915
    %v919 = vrot.slane %v917, 5
    %920 = vrot.lane.b32.xlu0 %v919, 68
    %v921 = vpop.permute.xlu0 %920
    %v922 = vsel %vm105, %v921, 0
    %924 = vmatprep.subr.mxu0 0.0
    %925 = vmatpush1.msra.mxu0 %v304
    %926 = vmatprep.subr.mxu0 0.0
    %927 = vmatpush1.msra.mxu0 %v305
    %928 = vmatprep.subr.mxu0 0.0
    %929 = vmatpush1.msra.mxu0 %v311
    %930 = vmatprep.subr.mxu0 0.0
    %931 = vmatpush1.msra.mxu0 0.0
    %932 = vmatprep.subr.mxu0 0.0
    %933 = vmatpush1.msra.mxu0 0.0
    %934 = vmatprep.subr.mxu0 0.0
    %935 = vmatpush1.msra.mxu0 0.0
    %936 = vmatprep.subr.mxu0 0.0
    %937 = vmatpush1.msra.mxu0 0.0
    %938 = vmatprep.subr.mxu0 0.0
    %939 = vmatpush1.msra.mxu0 0.0
    %940 = vmatprep.subr.mxu0 0.0
    %941 = vmatpush1.msra.mxu0 0.0
    %942 = vmatprep.subr.mxu0 0.0
    %943 = vmatpush1.msra.mxu0 0.0
    %944 = vmatprep.subr.mxu0 0.0
    %945 = vmatpush1.msra.mxu0 0.0
    %946 = vmatprep.subr.mxu0 0.0
    %947 = vmatpush1.msra.mxu0 0.0
    %948 = vmatprep.subr.mxu0 0.0
    %949 = vmatpush1.msra.mxu0 0.0
    %950 = vmatprep.subr.mxu0 0.0
    %951 = vmatpush1.msra.mxu0 0.0
    %952 = vmatprep.subr.mxu0 0.0
    %953 = vmatpush1.msra.mxu0 0.0
    %954 = vmatprep.subr.mxu0 0.0
    %955 = vmatpush1.msra.mxu0 0.0
    %956 = vmatprep.subr.mxu0 0.0
    %957 = vmatpush1.msra.mxu0 0.0
    %958 = vmatprep.subr.mxu0 0.0
    %959 = vmatpush1.msra.mxu0 0.0
    %960 = vmatprep.subr.mxu0 0.0
    %961 = vmatpush1.msra.mxu0 0.0
    %962 = vmatprep.subr.mxu0 0.0
    %963 = vmatpush1.msra.mxu0 0.0
    %964 = vmatprep.subr.mxu0 0.0
    %965 = vmatpush1.msra.mxu0 0.0
    %966 = vmatprep.subr.mxu0 0.0
    %967 = vmatpush1.msra.mxu0 0.0
    %968 = vmatprep.subr.mxu0 0.0
    %969 = vmatpush1.msra.mxu0 0.0
    %970 = vmatprep.subr.mxu0 0.0
    %971 = vmatpush1.msra.mxu0 0.0
    %972 = vmatprep.subr.mxu0 0.0
    %973 = vmatpush1.msra.mxu0 0.0
    %974 = vmatprep.subr.mxu0 0.0
    %975 = vmatpush1.msra.mxu0 0.0
    %976 = vmatprep.subr.mxu0 0.0
    %977 = vmatpush1.msra.mxu0 0.0
    %978 = vmatprep.subr.mxu0 0.0
    %979 = vmatpush1.msra.mxu0 0.0
    %980 = vmatprep.subr.mxu0 0.0
    %981 = vmatpush1.msra.mxu0 0.0
    %982 = vmatprep.subr.mxu0 0.0
    %983 = vmatpush1.msra.mxu0 0.0
    %984 = vmatprep.subr.mxu0 0.0
    %985 = vmatpush1.msra.mxu0 0.0
    %986 = vmatprep.subr.mxu0 0.0
    %987 = vmatpush1.msra.mxu0 0.0
    %988 = vmatprep.mubr.f32.mxu0 0.0
    %989 = vmatmul.mubr.f32.gmra.mrb[0].mxu0 %v922
    %v990 = vpop.f32.mrb[0].mxu0
    %v991 = vadd.f32 0.0, %v990
    %v992 = vpop.f32.mrb[0].mxu0
    %993 = vdwg.mxu0
    %v995 = vrot.slane %v991, 2
    %v997 = vadd.f32 %v301, %v995
    %v998 = vtanh.pop %v997
    %v999 = vmul.f32 %v998, 0.5
    %v1000 = vadd.f32 %v999, 0.5
    %v1002 = vrot.slane %v911, 7
    %v1004 = vmul.f32 %v1000, %v1002
    %1006 = vrot.lane.b32.xlu0 %v998, 88
    %v1007 = vpop.permute.xlu0 %1006
    %v1009 = vmul.f32 %v1000, %v1007
    %1011 = vrot.lane.b32.xlu0 %v1009, 20
    %v1012 = vpop.permute.xlu0 %1011
    %v1014 = vadd.f32 %v1004, %v1012
    %v1015 = vtanh.pop %v1014
    %1017 = vrot.lane.b32.xlu0 %v1015, 40
    %v1018 = vpop.permute.xlu0 %1017
    %v1020 = vmul.f32 %v1000, %v1018
    %v1022 = vrot.slane %v1020, 6
    %1023 = vrot.lane.b32.xlu0 %v1022, 68
    %v1024 = vpop.permute.xlu0 %1023
    %v1025 = vsel %vm105, %v1024, 0
    %1027 = vmatprep.subr.mxu0 0.0
    %1028 = vmatpush1.msra.mxu0 %v304
    %1029 = vmatprep.subr.mxu0 0.0
    %1030 = vmatpush1.msra.mxu0 %v305
    %1031 = vmatprep.subr.mxu0 0.0
    %1032 = vmatpush1.msra.mxu0 %v311
    %1033 = vmatprep.subr.mxu0 0.0
    %1034 = vmatpush1.msra.mxu0 0.0
    %1035 = vmatprep.subr.mxu0 0.0
    %1036 = vmatpush1.msra.mxu0 0.0
    %1037 = vmatprep.subr.mxu0 0.0
    %1038 = vmatpush1.msra.mxu0 0.0
    %1039 = vmatprep.subr.mxu0 0.0
    %1040 = vmatpush1.msra.mxu0 0.0
    %1041 = vmatprep.subr.mxu0 0.0
    %1042 = vmatpush1.msra.mxu0 0.0
    %1043 = vmatprep.subr.mxu0 0.0
    %1044 = vmatpush1.msra.mxu0 0.0
    %1045 = vmatprep.subr.mxu0 0.0
    %1046 = vmatpush1.msra.mxu0 0.0
    %1047 = vmatprep.subr.mxu0 0.0
    %1048 = vmatpush1.msra.mxu0 0.0
    %1049 = vmatprep.subr.mxu0 0.0
    %1050 = vmatpush1.msra.mxu0 0.0
    %1051 = vmatprep.subr.mxu0 0.0
    %1052 = vmatpush1.msra.mxu0 0.0
    %1053 = vmatprep.subr.mxu0 0.0
    %1054 = vmatpush1.msra.mxu0 0.0
    %1055 = vmatprep.subr.mxu0 0.0
    %1056 = vmatpush1.msra.mxu0 0.0
    %1057 = vmatprep.subr.mxu0 0.0
    %1058 = vmatpush1.msra.mxu0 0.0
    %1059 = vmatprep.subr.mxu0 0.0
    %1060 = vmatpush1.msra.mxu0 0.0
    %1061 = vmatprep.subr.mxu0 0.0
    %1062 = vmatpush1.msra.mxu0 0.0
    %1063 = vmatprep.subr.mxu0 0.0
    %1064 = vmatpush1.msra.mxu0 0.0
    %1065 = vmatprep.subr.mxu0 0.0
    %1066 = vmatpush1.msra.mxu0 0.0
    %1067 = vmatprep.subr.mxu0 0.0
    %1068 = vmatpush1.msra.mxu0 0.0
    %1069 = vmatprep.subr.mxu0 0.0
    %1070 = vmatpush1.msra.mxu0 0.0
    %1071 = vmatprep.subr.mxu0 0.0
    %1072 = vmatpush1.msra.mxu0 0.0
    %1073 = vmatprep.subr.mxu0 0.0
    %1074 = vmatpush1.msra.mxu0 0.0
    %1075 = vmatprep.subr.mxu0 0.0
    %1076 = vmatpush1.msra.mxu0 0.0
    %1077 = vmatprep.subr.mxu0 0.0
    %1078 = vmatpush1.msra.mxu0 0.0
    %1079 = vmatprep.subr.mxu0 0.0
    %1080 = vmatpush1.msra.mxu0 0.0
    %1081 = vmatprep.subr.mxu0 0.0
    %1082 = vmatpush1.msra.mxu0 0.0
    %1083 = vmatprep.subr.mxu0 0.0
    %1084 = vmatpush1.msra.mxu0 0.0
    %1085 = vmatprep.subr.mxu0 0.0
    %1086 = vmatpush1.msra.mxu0 0.0
    %1087 = vmatprep.subr.mxu0 0.0
    %1088 = vmatpush1.msra.mxu0 0.0
    %1089 = vmatprep.subr.mxu0 0.0
    %1090 = vmatpush1.msra.mxu0 0.0
    %1091 = vmatprep.mubr.f32.mxu0 0.0
    %1092 = vmatmul.mubr.f32.gmra.mrb[0].mxu0 %v1025
    %v1093 = vpop.f32.mrb[0].mxu0
    %v1094 = vadd.f32 0.0, %v1093
    %v1095 = vpop.f32.mrb[0].mxu0
    %1096 = vdwg.mxu0
    %v1098 = vrot.slane %v1094, 1
    %v1100 = vadd.f32 %v301, %v1098
    %v1101 = vtanh.pop %v1100
    %v1102 = vmul.f32 %v1101, 0.5
    %v1103 = vadd.f32 %v1102, 0.5
    %v1105 = vrot.slane %v1014, 7
    %v1107 = vmul.f32 %v1103, %v1105
    %1109 = vrot.lane.b32.xlu0 %v1101, 88
    %v1110 = vpop.permute.xlu0 %1109
    %v1112 = vmul.f32 %v1103, %v1110
    %1114 = vrot.lane.b32.xlu0 %v1112, 20
    %v1115 = vpop.permute.xlu0 %1114
    %v1117 = vadd.f32 %v1107, %v1115
    %v1118 = vtanh.pop %v1117
    %1120 = vrot.lane.b32.xlu0 %v1118, 40
    %v1121 = vpop.permute.xlu0 %1120
    %v1123 = vmul.f32 %v1103, %v1121
    %1124 = vst [vmem:[#allocation11 + $0x10] sm:$0xff] 0.0
    %1126 = vrot.lane.b32.xlu0 %v1123, 68
    %v1127 = vpop.permute.xlu0 %1126
    %vm1129 = vcmask 162823
    %1130 = vst.msk [vmem:[#allocation11 + $0x9] sm:$0x80] %vm1129, %v1127
    %1132 = vrot.lane.b32.xlu0 %v1117, 108
    %v1133 = vpop.permute.xlu0 %1132
    %1135 = vst.msk [vmem:[#allocation11 + $0xa] sm:$0x80] %vm1129, %v1133
    // Predicated region
    $region50: #{tpu_custom_call.1} parent=1 // pred_check
      _
    $region51: #{tpu_custom_call.1} parent=1 // pred_check_branch
      %1137 = sbr.rel (0) target = $region53
    $region52: #{tpu_custom_call.1} parent=1 // pred_region
      %s1139 = ssub.s32 384, 384
      %1140 = vsyncadd [#allocation4], %s1139
      %s1141 = sshll.u32 [#allocation11], 4
      %s1142 = int_to_ptr.vmem [resolvable:$true] %s1141
      %1147 = dma.vmem_to_hbm [thread:$0]  %s1142, 384, %s7, [#allocation4], 128, 128, 8
    $region53: #{tpu_custom_call.1} parent=1 // pred_fallthru
      _
    // Predicated region
    $region54: #{tpu_custom_call.1} parent=1 // pred_check
      _
    $region55: #{tpu_custom_call.1} parent=1 // pred_check_branch
      %1149 = sbr.rel (0) target = $region57
    $region56: #{tpu_custom_call.1} parent=1 // pred_region
      %1150 = dma.done [#allocation4], 384
    $region57: #{tpu_custom_call.1} parent=1 // pred_fallthru
      _
    %1151 = vsyncpa [#allocation3], 1
    %1152 = vsyncpa [#allocation6], 1
    %1153 = vsyncpa [#allocation9], 1
    %1154 = vsyncpa [#allocation4], 1

</llo_original>
